<compile_context>
chip_gen: v7x
topology: tpu7x:2x2x1
jax: 0.10.0
libtpu: 0.0.40
codegen_flags: <defaults>
</compile_context>

<pallas_src>
import functools

import jax
import jax.numpy as jnp
from jax.experimental import pallas as pl
from jax.experimental.pallas import tpu as pltpu

LANE = 128
SUBLANE = 8
NEG_MASK = -1e30  # additive softmax mask; relies on the f32 epilogue (no overflow)


def _round_up(n, m):
    return ((n + m - 1) // m) * m


def actor_critic_fused_kernel(x_ref, w_ref, b_ref, out_ref, *, kdim):
    """One batch tile of the fused ActorCritic forward.

    x_ref:   (TB, Dk) f32 input tile (true feature width, not lane-padded).
    w_ref:   (4, P, P) pre-transposed (in, out) weights in compute dtype:
             [linear1, linear2, linear3, fused actor|critic head].
    b_ref:   (6, P) f32: [b1, b2, b3, fused head bias,
                          actor softmax additive mask, critic lane select].
    out_ref: (TB, P) f32 lane-packed: [0,H)=trunk, [H,H+A)=probs, [H+A,..)=value.
    """
    def dense(h, i, w):
        if h.dtype != w.dtype:
            h = h.astype(w.dtype)          # bf16 MXU operands; f32 accumulate
        y = jnp.dot(h, w, preferred_element_type=jnp.float32)
        return y + b_ref[i:i + 1, :]       # f32 bias epilogue (v5e-safe)

    h1 = jnp.maximum(dense(x_ref[...], 0, w_ref[0, :kdim, :]), 0.0)
    h2 = jnp.maximum(dense(h1, 1, w_ref[1]), 0.0)
    h3 = jnp.maximum(dense(h2, 2, w_ref[2]), 0.0)   # trunk; 0 outside lanes [0,H)

    # Fused actor+critic head: logits land in lanes [H,H+A), values in [H+A,H+A+Q).
    y = dense(h3, 3, w_ref[3])
    masked = y + b_ref[4:5, :]                       # -1e30 off the actor lanes
    m = jnp.max(masked, axis=-1, keepdims=True)
    p = jnp.exp(masked - m)                          # exactly 0 off the actor lanes
    probs = p * pl.reciprocal(jnp.sum(p, axis=-1, keepdims=True), approx=True)

    # h3 is 0 outside [0,H); probs is 0 outside [H,H+A); the precomputed select
    # row keeps only the critic lanes of y -> one packed, lane-dense store.
    out_ref[...] = (h3 + probs + y * b_ref[5:6, :]).astype(out_ref.dtype)


def pack_params(params, compute_dtype=jnp.float32):
    """Pre-transpose to (in,out), zero-pad to a square lane-dense P, fuse the two
    heads into one matrix at their output lane offsets, pre-cast to compute dtype,
    and bake the softmax / lane-select masks into extra bias rows."""
    w1, b1 = params["w1"], params["b1"]   # (H, D)
    w2, b2 = params["w2"], params["b2"]   # (2H, H)
    w3, b3 = params["w3"], params["b3"]   # (H, 2H)
    wa, ba = params["wa"], params["ba"]   # (A, H)
    wc, bc = params["wc"], params["bc"]   # (Q, H)
    H, D = (int(s) for s in w1.shape)
    A, Q = int(wa.shape[0]), int(wc.shape[0])

    cdt = jnp.dtype(compute_dtype)
    sub = SUBLANE * max(1, 4 // cdt.itemsize)        # 8 for f32, 16 for bf16
    Dk = _round_up(D, sub)                           # first-layer contraction rows
    P = _round_up(max(D, 2 * H, H + A + Q), LANE)
    assert H + A + Q <= P, "packed output lanes must fit in P"

    def place(w):                                     # (out,in) -> padded (in,out)
        o, i = w.shape
        return jnp.zeros((P, P), jnp.float32).at[:i, :o].set(w.T)

    w_head = (jnp.zeros((P, P), jnp.float32)
              .at[:H, H:H + A].set(wa.T)
              .at[:H, H + A:H + A + Q].set(wc.T))
    w_slab = jnp.stack([place(w1), place(w2), place(w3), w_head]).astype(cdt)

    def pad_b(b):
        return jnp.zeros((P,), jnp.float32).at[:b.shape[0]].set(b)

    b_head = (jnp.zeros((P,), jnp.float32)
              .at[H:H + A].set(ba).at[H + A:H + A + Q].set(bc))
    actor_mask = jnp.full((P,), NEG_MASK, jnp.float32).at[H:H + A].set(0.0)
    value_sel = jnp.zeros((P,), jnp.float32).at[H + A:H + A + Q].set(1.0)
    b_slab = jnp.stack([pad_b(b1), pad_b(b2), pad_b(b3),
                        b_head, actor_mask, value_sel])

    layout = dict(D=D, Dk=Dk, H=H, A=A, Q=Q, P=P)
    return w_slab, b_slab, layout


def _fused_call(x, w_slab, b_slab, layout, *, block_b=1024):
    B, D = x.shape
    assert D == layout["D"]
    NW, P, _ = w_slab.shape
    NB = b_slab.shape[0]
    Dk = layout["Dk"]

    # Balanced batch tiles (multiple of 8 sublanes); avoids 41%-padding cases.
    n_tiles = -(-B // block_b)
    TB = _round_up(-(-B // n_tiles), SUBLANE)
    Bp = _round_up(B, TB)

    xk = x.astype(jnp.float32)
    if (Bp, Dk) != (B, D):                 # pad batch rows (and Dk lanes) only if needed
        xk = jnp.zeros((Bp, Dk), jnp.float32).at[:B, :D].set(xk)

    kernel = functools.partial(actor_critic_fused_kernel, kdim=Dk)
    wbytes = jnp.dtype(w_slab.dtype).itemsize
    cost = pl.CostEstimate(
        flops=int(2 * Bp * P * (Dk + 3 * P)),
        transcendentals=int(Bp * (P + 1)),
        bytes_accessed=int(4 * Bp * Dk + wbytes * NW * P * P
                           + 4 * NB * P + 4 * Bp * P))

    out = pl.pallas_call(
        kernel,
        out_shape=jax.ShapeDtypeStruct((Bp, P), jnp.float32),
        grid=(Bp // TB,),
        in_specs=[pl.BlockSpec((TB, Dk), lambda i: (i, 0)),
                  # Constant index_map -> weight/bias slabs stay VMEM-resident.
                  pl.BlockSpec((NW, P, P), lambda i: (0, 0, 0)),
                  pl.BlockSpec((NB, P), lambda i: (0, 0))],
        out_specs=pl.BlockSpec((TB, P), lambda i: (i, 0)),
        compiler_params=pltpu.CompilerParams(
            dimension_semantics=("parallel",)),   # shards tiles across v7x's 2 TCs
        cost_estimate=cost,
    )(xk, w_slab, b_slab)
    return out


def actor_critic_forward(x, w_slab, b_slab, layout, **kw):
    """Matches ActorCritic.forward(x): returns the ReLU trunk output (B, H)."""
    out = _fused_call(x, w_slab, b_slab, layout, **kw)
    return out[:x.shape[0], :layout["H"]]


def actor_critic_evaluate_actions(x, w_slab, b_slab, layout, **kw):
    """Matches ActorCritic.evaluate_actions(x): (softmax(actor), critic)."""
    out = _fused_call(x, w_slab, b_slab, layout, **kw)
    B, H, A, Q = x.shape[0], layout["H"], layout["A"], layout["Q"]
    return out[:B, H:H + A], out[:B, H + A:H + A + Q]


def init_params(key, input_dim, num_hidden, num_actions, num_q_values):
    """PyTorch-style uniform(+-1/sqrt(fan_in)); weights (out,in), biases (out,)."""
    def linear_init(k, out_f, in_f):
        kw, kb = jax.random.split(k)
        bound = 1.0 / float(in_f) ** 0.5
        w = jax.random.uniform(kw, (out_f, in_f), jnp.float32, -bound, bound)
        b = jax.random.uniform(kb, (out_f,), jnp.float32, -bound, bound)
        return w, b

    k1, k2, k3, k4, k5 = jax.random.split(key, 5)
    w1, b1 = linear_init(k1, num_hidden, input_dim)
    w2, b2 = linear_init(k2, num_hidden * 2, num_hidden)
    w3, b3 = linear_init(k3, num_hidden, num_hidden * 2)
    wa, ba = linear_init(k4, num_actions, num_hidden)
    wc, bc = linear_init(k5, num_q_values, num_hidden)
    return {"w1": w1, "b1": b1, "w2": w2, "b2": b2, "w3": w3, "b3": b3,
            "wa": wa, "ba": ba, "wc": wc, "bc": bc}


def reference_forward(x, p):
    h1 = jnp.maximum(x @ p["w1"].T + p["b1"], 0.0)
    h2 = jnp.maximum(h1 @ p["w2"].T + p["b2"], 0.0)
    h3 = jnp.maximum(h2 @ p["w3"].T + p["b3"], 0.0)
    return h3


def reference_evaluate_actions(x, p):
    h3 = reference_forward(x, p)
    probs = jax.nn.softmax(h3 @ p["wa"].T + p["ba"], axis=-1)
    value = h3 @ p["wc"].T + p["bc"]
    return probs, value


if __name__ == "__main__":
    # ActorCritic(input_dim=32, num_actions=4, num_hidden=32, num_q_values=1)
    B, INPUT_DIM, NUM_HIDDEN, NUM_ACTIONS, NUM_Q = 8, 32, 32, 4, 1

    key = jax.random.PRNGKey(0)
    kx, kp = jax.random.split(key)
    x = jax.random.normal(kx, (B, INPUT_DIM), dtype=jnp.float32)
    params = init_params(kp, INPUT_DIM, NUM_HIDDEN, NUM_ACTIONS, NUM_Q)

    # One-time pack (not on the hot path), f32 MXU path.
    w_slab, b_slab, layout = pack_params(params, compute_dtype=jnp.float32)

    # forward() semantics (trunk only).
    trunk = actor_critic_forward(x, w_slab, b_slab, layout)
    trunk = jax.block_until_ready(trunk)
    ref_trunk = reference_forward(x, params)
    assert trunk.shape == (B, NUM_HIDDEN)
    assert jnp.allclose(trunk, ref_trunk, atol=1e-5, rtol=1e-5), "trunk mismatch"

    # Fused actor/critic heads (evaluate_actions semantics).
    probs, value = actor_critic_evaluate_actions(x, w_slab, b_slab, layout)
    jax.block_until_ready((probs, value))
    ref_probs, ref_value = reference_evaluate_actions(x, params)
    assert probs.shape == (B, NUM_ACTIONS) and value.shape == (B, NUM_Q)
    # approx-reciprocal softmax normalization -> slightly looser tolerance.
    assert jnp.allclose(probs, ref_probs, atol=1e-3, rtol=1e-3), "probs mismatch"
    assert jnp.allclose(value, ref_value, atol=1e-4, rtol=1e-4), "value mismatch"

    # bf16 MXU operands (fast path on all generations), f32 accumulate + epilogue.
    w_bf, b_bf, layout_bf = pack_params(params, compute_dtype=jnp.bfloat16)
    trunk_bf16 = actor_critic_forward(x, w_bf, b_bf, layout_bf)
    trunk_bf16 = jax.block_until_ready(trunk_bf16)
    assert jnp.allclose(trunk_bf16, ref_trunk, atol=1e-1, rtol=1e-1), "bf16 mismatch"

    print("KERNEL_OK")
</pallas_src>

<mosaic_0001>
module attributes {stable_mosaic.version = 11 : i64} {
  func.func @actor_critic_fused_kernel(%arg0: i32, %arg1: memref<8x32xf32, #tpu.memory_space<vmem>>, %arg2: memref<4x128x128xf32, #tpu.memory_space<vmem>>, %arg3: memref<6x128xf32, #tpu.memory_space<vmem>>, %arg4: memref<8x128xf32, #tpu.memory_space<vmem>>) attributes {dimension_semantics = [#tpu.dimension_semantics<parallel>], iteration_bounds = array<i64: 1>, scalar_prefetch = 0 : i64, scratch_operands = 0 : i64, tpu.core_type = #tpu.core_type<tc>, window_params = [{transform_indices = @transform_0, window_bounds = array<i64: 8, 32>}, {pipeline_mode = #tpu.pipeline_mode<synchronous>, transform_indices = @transform_1, window_bounds = array<i64: 4, 128, 128>}, {pipeline_mode = #tpu.pipeline_mode<synchronous>, transform_indices = @transform_2, window_bounds = array<i64: 6, 128>}, {transform_indices = @transform_3, window_bounds = array<i64: 8, 128>}]} {
    %c0 = arith.constant 0 : index
    %c0_0 = arith.constant 0 : index
    %0 = vector.load %arg1[%c0, %c0_0] : memref<8x32xf32, #tpu.memory_space<vmem>>, vector<8x32xf32>
    %c0_1 = arith.constant 0 : index
    %c0_2 = arith.constant 0 : index
    %c0_3 = arith.constant 0 : index
    %1 = vector.load %arg2[%c0_1, %c0_2, %c0_3] : memref<4x128x128xf32, #tpu.memory_space<vmem>>, vector<1x32x128xf32>
    %2 = vector.shape_cast %1 : vector<1x32x128xf32> to vector<32x128xf32>
    %cst = arith.constant dense<0.000000e+00> : vector<8x128xf32>
    %3 = tpu.matmul %0, %2, %cst {dimension_numbers = #tpu.dot_dimension_numbers<[1], [0], [0], [1], [0, 0, 1, 1], [], []>} : vector<8x32xf32>, vector<32x128xf32>, vector<8x128xf32> -> vector<8x128xf32>
    %c0_4 = arith.constant 0 : index
    %c0_5 = arith.constant 0 : index
    %4 = vector.load %arg3[%c0_4, %c0_5] : memref<6x128xf32, #tpu.memory_space<vmem>>, vector<1x128xf32>
    %5 = vector.broadcast %4 : vector<1x128xf32> to vector<8x128xf32>
    %6 = arith.addf %3, %5 : vector<8x128xf32>
    %cst_6 = arith.constant 0.000000e+00 : f32
    %7 = vector.broadcast %cst_6 : f32 to vector<8x128xf32>
    %8 = arith.maximumf %6, %7 : vector<8x128xf32>
    %c1 = arith.constant 1 : index
    %c0_7 = arith.constant 0 : index
    %c0_8 = arith.constant 0 : index
    %9 = vector.load %arg2[%c1, %c0_7, %c0_8] : memref<4x128x128xf32, #tpu.memory_space<vmem>>, vector<1x128x128xf32>
    %10 = vector.shape_cast %9 : vector<1x128x128xf32> to vector<128x128xf32>
    %cst_9 = arith.constant dense<0.000000e+00> : vector<8x128xf32>
    %11 = tpu.matmul %8, %10, %cst_9 {dimension_numbers = #tpu.dot_dimension_numbers<[1], [0], [0], [1], [0, 0, 1, 1], [], []>} : vector<8x128xf32>, vector<128x128xf32>, vector<8x128xf32> -> vector<8x128xf32>
    %c1_10 = arith.constant 1 : index
    %c0_11 = arith.constant 0 : index
    %12 = vector.load %arg3[%c1_10, %c0_11] : memref<6x128xf32, #tpu.memory_space<vmem>>, vector<1x128xf32>
    %13 = vector.broadcast %12 : vector<1x128xf32> to vector<8x128xf32>
    %14 = arith.addf %11, %13 : vector<8x128xf32>
    %cst_12 = arith.constant 0.000000e+00 : f32
    %15 = vector.broadcast %cst_12 : f32 to vector<8x128xf32>
    %16 = arith.maximumf %14, %15 : vector<8x128xf32>
    %c2 = arith.constant 2 : index
    %c0_13 = arith.constant 0 : index
    %c0_14 = arith.constant 0 : index
    %17 = vector.load %arg2[%c2, %c0_13, %c0_14] : memref<4x128x128xf32, #tpu.memory_space<vmem>>, vector<1x128x128xf32>
    %18 = vector.shape_cast %17 : vector<1x128x128xf32> to vector<128x128xf32>
    %cst_15 = arith.constant dense<0.000000e+00> : vector<8x128xf32>
    %19 = tpu.matmul %16, %18, %cst_15 {dimension_numbers = #tpu.dot_dimension_numbers<[1], [0], [0], [1], [0, 0, 1, 1], [], []>} : vector<8x128xf32>, vector<128x128xf32>, vector<8x128xf32> -> vector<8x128xf32>
    %c2_16 = arith.constant 2 : index
    %c0_17 = arith.constant 0 : index
    %20 = vector.load %arg3[%c2_16, %c0_17] : memref<6x128xf32, #tpu.memory_space<vmem>>, vector<1x128xf32>
    %21 = vector.broadcast %20 : vector<1x128xf32> to vector<8x128xf32>
    %22 = arith.addf %19, %21 : vector<8x128xf32>
    %cst_18 = arith.constant 0.000000e+00 : f32
    %23 = vector.broadcast %cst_18 : f32 to vector<8x128xf32>
    %24 = arith.maximumf %22, %23 : vector<8x128xf32>
    %c3 = arith.constant 3 : index
    %c0_19 = arith.constant 0 : index
    %c0_20 = arith.constant 0 : index
    %25 = vector.load %arg2[%c3, %c0_19, %c0_20] : memref<4x128x128xf32, #tpu.memory_space<vmem>>, vector<1x128x128xf32>
    %26 = vector.shape_cast %25 : vector<1x128x128xf32> to vector<128x128xf32>
    %cst_21 = arith.constant dense<0.000000e+00> : vector<8x128xf32>
    %27 = tpu.matmul %24, %26, %cst_21 {dimension_numbers = #tpu.dot_dimension_numbers<[1], [0], [0], [1], [0, 0, 1, 1], [], []>} : vector<8x128xf32>, vector<128x128xf32>, vector<8x128xf32> -> vector<8x128xf32>
    %c3_22 = arith.constant 3 : index
    %c0_23 = arith.constant 0 : index
    %28 = vector.load %arg3[%c3_22, %c0_23] : memref<6x128xf32, #tpu.memory_space<vmem>>, vector<1x128xf32>
    %29 = vector.broadcast %28 : vector<1x128xf32> to vector<8x128xf32>
    %30 = arith.addf %27, %29 : vector<8x128xf32>
    %c4 = arith.constant 4 : index
    %c0_24 = arith.constant 0 : index
    %31 = vector.load %arg3[%c4, %c0_24] : memref<6x128xf32, #tpu.memory_space<vmem>>, vector<1x128xf32>
    %32 = vector.broadcast %31 : vector<1x128xf32> to vector<8x128xf32>
    %33 = arith.addf %30, %32 : vector<8x128xf32>
    %cst_25 = arith.constant dense<0xFF800000> : vector<8xf32>
    %34 = vector.multi_reduction <maximumf>, %33, %cst_25 [1] : vector<8x128xf32> to vector<8xf32>
    %35 = vector.shape_cast %34 : vector<8xf32> to vector<8x1xf32>
    %36 = vector.broadcast %35 : vector<8x1xf32> to vector<8x128xf32>
    %37 = arith.subf %33, %36 : vector<8x128xf32>
    %38 = math.exp %37 : vector<8x128xf32>
    %cst_26 = arith.constant dense<0.000000e+00> : vector<8xf32>
    %39 = vector.multi_reduction <add>, %38, %cst_26 [1] : vector<8x128xf32> to vector<8xf32>
    %40 = vector.shape_cast %39 : vector<8xf32> to vector<8x1xf32>
    %41 = tpu.reciprocal %40 {approx = true} : vector<8x1xf32> -> vector<8x1xf32>
    %42 = vector.broadcast %41 : vector<8x1xf32> to vector<8x128xf32>
    %43 = arith.mulf %38, %42 : vector<8x128xf32>
    %44 = arith.addf %24, %43 : vector<8x128xf32>
    %c5 = arith.constant 5 : index
    %c0_27 = arith.constant 0 : index
    %45 = vector.load %arg3[%c5, %c0_27] : memref<6x128xf32, #tpu.memory_space<vmem>>, vector<1x128xf32>
    %46 = vector.broadcast %45 : vector<1x128xf32> to vector<8x128xf32>
    %47 = arith.mulf %30, %46 : vector<8x128xf32>
    %48 = arith.addf %44, %47 : vector<8x128xf32>
    %c0_28 = arith.constant 0 : index
    %c0_29 = arith.constant 0 : index
    %49 = vector.load %arg4[%c0_28, %c0_29] : memref<8x128xf32, #tpu.memory_space<vmem>>, vector<8x128xf32>
    tpu.vector_store %arg4[%c0_28, %c0_29], %48 {strides = array<i32>} : memref<8x128xf32, #tpu.memory_space<vmem>>, vector<8x128xf32>,
    return
  }
  func.func @transform_0(%arg0: i32) -> (i32, i32) {
    %c0_i32 = arith.constant 0 : i32
    %c0_i32_0 = arith.constant 0 : i32
    return %arg0, %c0_i32 : i32, i32
  }
  func.func @transform_1(%arg0: i32) -> (i32, i32, i32) {
    %c0_i32 = arith.constant 0 : i32
    %c0_i32_0 = arith.constant 0 : i32
    %c0_i32_1 = arith.constant 0 : i32
    %c0_i32_2 = arith.constant 0 : i32
    return %c0_i32, %c0_i32_0, %c0_i32_1 : i32, i32, i32
  }
  func.func @transform_2(%arg0: i32) -> (i32, i32) {
    %c0_i32 = arith.constant 0 : i32
    %c0_i32_0 = arith.constant 0 : i32
    %c0_i32_1 = arith.constant 0 : i32
    return %c0_i32, %c0_i32_0 : i32, i32
  }
  func.func @transform_3(%arg0: i32) -> (i32, i32) {
    %c0_i32 = arith.constant 0 : i32
    %c0_i32_0 = arith.constant 0 : i32
    return %arg0, %c0_i32 : i32, i32
  }
}

</mosaic_0001>

<llo_original>
// kernel: tpu_custom_call.1
$region0: #{tpu_custom_call.1}
  #allocation0 [shape = 'u32[]', space=smem, size = 0x4, offset = 0x4, fixed_abs, tag = 'smem constant byte address 0x4 - core index']
  #allocation1 [shape = 'u32[144,128]{1,0:T(1,128)}', space=vmem, size = 0x12000, scoped, tag = 'internal scratch']
  %s0 = inlined_call_operand.hbm [shape: f32[8,32], index: 0, kind: input, shape index: {}]
  %s1 = inlined_call_operand.hbm [shape: f32[4,128,128], index: 1, kind: input, shape index: {}]
  %s2 = inlined_call_operand.hbm [shape: f32[6,128], index: 2, kind: input, shape index: {}]
  %s3 = inlined_call_operand.hbm [shape: f32[8,128], index: 3, kind: output, shape index: {}]
  %s4 = sld [smem:[#allocation0]]
  $region34: #{tpu_custom_call.1} parent=0
    _
  %s6 = ssub.s32 1, %s4
  %s7 = scalar_select 0, %s6, %s4
  $region1: #{tpu_custom_call.1} parent=0
    #allocation2 [shape = 'u8[4096]{0}', space=vmem, size = 0x1000, scoped, tag = 'input window, operand 0, single buffered']
    #allocation3 [shape = 's32[1]{0}', space=sflag, size = 0x4, scoped, tag = 'scoped memory for tpu_custom_call.1']
    #allocation4 [shape = 's32[1]{0}', space=sflag, size = 0x4, scoped, tag = 'scoped memory for tpu_custom_call.1']
    #allocation5 [shape = 'u8[262144]{0}', space=vmem, size = 0x40000, scoped, tag = 'input window, operand 1, single buffered']
    #allocation6 [shape = 's32[1]{0}', space=sflag, size = 0x4, scoped, tag = 'scoped memory for tpu_custom_call.1']
    #allocation7 [shape = 'u8[4096]{0}', space=vmem, size = 0x1000, scoped, tag = 'input window, operand 2, single buffered']
    #allocation8 [shape = 'u8[4096]{0}', space=vmem, size = 0x1000, scoped, tag = 'output window, operand 0, single buffered']
    %8 = vsyncpa [#allocation3], 0
    %9 = vsyncpa [#allocation6], 0
    %10 = vsyncpa [#allocation4], 0
    // Predicated region
    $region2: #{tpu_custom_call.1} parent=1 // pred_check
      _
    $region3: #{tpu_custom_call.1} parent=1 // pred_check_branch
      %12 = sbr.rel (0) target = $region5
    $region4: #{tpu_custom_call.1} parent=1 // pred_region
      %s14 = ssub.s32 128, 128
      %15 = vsyncadd [#allocation3], %s14
      %s17 = sshll.u32 [#allocation2], 4
      %s18 = int_to_ptr.vmem [resolvable:$true] %s17
      %20 = dma.hbm_to_vmem [thread:$0]  %s0, 128, %s18, [#allocation3]
    $region5: #{tpu_custom_call.1} parent=1 // pred_fallthru
      _
    // Predicated region
    $region6: #{tpu_custom_call.1} parent=1 // pred_check
      _
    $region7: #{tpu_custom_call.1} parent=1 // pred_check_branch
      %22 = sbr.rel (0) target = $region9
    $region8: #{tpu_custom_call.1} parent=1 // pred_region
      %s24 = ssub.s32 8192, 8192
      %25 = vsyncadd [#allocation6], %s24
      %s26 = sshll.u32 [#allocation5], 4
      %s27 = int_to_ptr.vmem [resolvable:$true] %s26
      %32 = dma.hbm_to_vmem [thread:$0]  %s1, 8192, %s27, [#allocation6], 128, 128, 8
    $region9: #{tpu_custom_call.1} parent=1 // pred_fallthru
      _
    // Predicated region
    $region10: #{tpu_custom_call.1} parent=1 // pred_check
      _
    $region11: #{tpu_custom_call.1} parent=1 // pred_check_branch
      %34 = sbr.rel (0) target = $region13
    $region12: #{tpu_custom_call.1} parent=1 // pred_region
      %s36 = ssub.s32 128, 128
      %37 = vsyncadd [#allocation6], %s36
      %s39 = sshll.u32 [#allocation7], 4
      %s40 = int_to_ptr.vmem [resolvable:$true] %s39
      %42 = dma.hbm_to_vmem [thread:$0]  %s2, 128, %s40, [#allocation6]
    $region13: #{tpu_custom_call.1} parent=1 // pred_fallthru
      _
    // Predicated region
    $region14: #{tpu_custom_call.1} parent=1 // pred_check
      _
    $region15: #{tpu_custom_call.1} parent=1 // pred_check_branch
      %44 = sbr.rel (0) target = $region17
    $region16: #{tpu_custom_call.1} parent=1 // pred_region
      %45 = dma.done [#allocation3], 128
    $region17: #{tpu_custom_call.1} parent=1 // pred_fallthru
      _
    // Predicated region
    $region18: #{tpu_custom_call.1} parent=1 // pred_check
      _
    $region19: #{tpu_custom_call.1} parent=1 // pred_check_branch
      %47 = sbr.rel (0) target = $region21
    $region20: #{tpu_custom_call.1} parent=1 // pred_region
      %48 = dma.done [#allocation6], 8192
    $region21: #{tpu_custom_call.1} parent=1 // pred_fallthru
      _
    // Predicated region
    $region22: #{tpu_custom_call.1} parent=1 // pred_check
      _
    $region23: #{tpu_custom_call.1} parent=1 // pred_check_branch
      %50 = sbr.rel (0) target = $region25
    $region24: #{tpu_custom_call.1} parent=1 // pred_region
      %51 = dma.done [#allocation6], 128
    $region25: #{tpu_custom_call.1} parent=1 // pred_fallthru
      _
    %v52 = vld [vmem:[#allocation2] sm:$0xff]
    %v53 = vld [vmem:[#allocation5] sm:$0xff]
    %v54 = vld [vmem:[#allocation5 + $0x8] sm:$0xff]
    %v55 = vld [vmem:[#allocation5 + $0x10] sm:$0xff]
    %v56 = vld [vmem:[#allocation5 + $0x18] sm:$0xff]
    %v57 = vld [vmem:[#allocation7] sm:$0x1]
    %v58 = vlaneseq
    %v59 = vshrl.u32 %v58, 7
    %v60 = vsub.s32 0, %v59
    %v61 = vrot.slane %v57, %v60
    %vm62 = vcmask 261120
    %v64 = vsel %vm62, %v52, 0
    %66 = vmatprep.subr.mxu0 0.0
    %67 = vmatpush1.msra.mxu0 %v53
    %68 = vmatprep.subr.mxu0 0.0
    %69 = vmatpush1.msra.mxu0 %v54
    %70 = vmatprep.subr.mxu0 0.0
    %71 = vmatpush1.msra.mxu0 %v55
    %72 = vmatprep.subr.mxu0 0.0
    %73 = vmatpush1.msra.mxu0 %v56
    %74 = vmatprep.subr.mxu0 0.0
    %75 = vmatpush1.msra.mxu0 0.0
    %76 = vmatprep.subr.mxu0 0.0
    %77 = vmatpush1.msra.mxu0 0.0
    %78 = vmatprep.subr.mxu0 0.0
    %79 = vmatpush1.msra.mxu0 0.0
    %80 = vmatprep.subr.mxu0 0.0
    %81 = vmatpush1.msra.mxu0 0.0
    %82 = vmatprep.subr.mxu0 0.0
    %83 = vmatpush1.msra.mxu0 0.0
    %84 = vmatprep.subr.mxu0 0.0
    %85 = vmatpush1.msra.mxu0 0.0
    %86 = vmatprep.subr.mxu0 0.0
    %87 = vmatpush1.msra.mxu0 0.0
    %88 = vmatprep.subr.mxu0 0.0
    %89 = vmatpush1.msra.mxu0 0.0
    %90 = vmatprep.subr.mxu0 0.0
    %91 = vmatpush1.msra.mxu0 0.0
    %92 = vmatprep.subr.mxu0 0.0
    %93 = vmatpush1.msra.mxu0 0.0
    %94 = vmatprep.subr.mxu0 0.0
    %95 = vmatpush1.msra.mxu0 0.0
    %96 = vmatprep.subr.mxu0 0.0
    %97 = vmatpush1.msra.mxu0 0.0
    %98 = vmatprep.subr.mxu0 0.0
    %99 = vmatpush1.msra.mxu0 0.0
    %100 = vmatprep.subr.mxu0 0.0
    %101 = vmatpush1.msra.mxu0 0.0
    %102 = vmatprep.subr.mxu0 0.0
    %103 = vmatpush1.msra.mxu0 0.0
    %104 = vmatprep.subr.mxu0 0.0
    %105 = vmatpush1.msra.mxu0 0.0
    %106 = vmatprep.subr.mxu0 0.0
    %107 = vmatpush1.msra.mxu0 0.0
    %108 = vmatprep.subr.mxu0 0.0
    %109 = vmatpush1.msra.mxu0 0.0
    %110 = vmatprep.subr.mxu0 0.0
    %111 = vmatpush1.msra.mxu0 0.0
    %112 = vmatprep.subr.mxu0 0.0
    %113 = vmatpush1.msra.mxu0 0.0
    %114 = vmatprep.subr.mxu0 0.0
    %115 = vmatpush1.msra.mxu0 0.0
    %116 = vmatprep.subr.mxu0 0.0
    %117 = vmatpush1.msra.mxu0 0.0
    %118 = vmatprep.subr.mxu0 0.0
    %119 = vmatpush1.msra.mxu0 0.0
    %120 = vmatprep.subr.mxu0 0.0
    %121 = vmatpush1.msra.mxu0 0.0
    %122 = vmatprep.subr.mxu0 0.0
    %123 = vmatpush1.msra.mxu0 0.0
    %124 = vmatprep.subr.mxu0 0.0
    %125 = vmatpush1.msra.mxu0 0.0
    %126 = vmatprep.subr.mxu0 0.0
    %127 = vmatpush1.msra.mxu0 0.0
    %128 = vmatprep.subr.mxu0 0.0
    %129 = vmatpush1.msra.mxu0 0.0
    %130 = vmatprep.mubr.f32.mxu0 0.0
    %131 = vmatmul.mubr.f32.gmra.mrb[0].mxu0 %v64
    %v132 = vpop.f32.mrb[0].mxu0
    %v133 = vadd.f32 %v61, %v132
    %v134 = vpop.f32.mrb[0].mxu0
    %135 = vdwg.mxu0
    %v136 = vmax.f32 %v133, 0.0
    %s137 = scalar_lea.vmem [#allocation5], 128
    %v138 = vld [vmem:[%s137] sm:$0xff]
    %v139 = vld [vmem:[%s137 + $0x8] sm:$0xff]
    %v140 = vld [vmem:[%s137 + $0x10] sm:$0xff]
    %v141 = vld [vmem:[%s137 + $0x18] sm:$0xff]
    %v142 = vld [vmem:[%s137 + $0x20] sm:$0xff]
    %v143 = vld [vmem:[%s137 + $0x28] sm:$0xff]
    %v144 = vld [vmem:[%s137 + $0x30] sm:$0xff]
    %v145 = vld [vmem:[%s137 + $0x38] sm:$0xff]
    %v146 = vld [vmem:[%s137 + $0x40] sm:$0xff]
    %v147 = vld [vmem:[%s137 + $0x48] sm:$0xff]
    %v148 = vld [vmem:[%s137 + $0x50] sm:$0xff]
    %v149 = vld [vmem:[%s137 + $0x58] sm:$0xff]
    %v150 = vld [vmem:[%s137 + $0x60] sm:$0xff]
    %v151 = vld [vmem:[%s137 + $0x68] sm:$0xff]
    %v152 = vld [vmem:[%s137 + $0x70] sm:$0xff]
    %v153 = vld [vmem:[%s137 + $0x78] sm:$0xff]
    %v154 = vld [vmem:[#allocation7 + $0x1] sm:$0x1]
    %v155 = vlaneseq
    %v156 = vshrl.u32 %v155, 7
    %v157 = vsub.s32 0, %v156
    %v158 = vrot.slane %v154, %v157
    %159 = vmatprep.subr.mxu0 0.0
    %160 = vmatpush1.msra.mxu0 %v138
    %161 = vmatprep.subr.mxu0 0.0
    %162 = vmatpush1.msra.mxu0 %v139
    %163 = vmatprep.subr.mxu0 0.0
    %164 = vmatpush1.msra.mxu0 %v140
    %165 = vmatprep.subr.mxu0 0.0
    %166 = vmatpush1.msra.mxu0 %v141
    %167 = vmatprep.subr.mxu0 0.0
    %168 = vmatpush1.msra.mxu0 %v142
    %169 = vmatprep.subr.mxu0 0.0
    %170 = vmatpush1.msra.mxu0 %v143
    %171 = vmatprep.subr.mxu0 0.0
    %172 = vmatpush1.msra.mxu0 %v144
    %173 = vmatprep.subr.mxu0 0.0
    %174 = vmatpush1.msra.mxu0 %v145
    %175 = vmatprep.subr.mxu0 0.0
    %176 = vmatpush1.msra.mxu0 %v146
    %177 = vmatprep.subr.mxu0 0.0
    %178 = vmatpush1.msra.mxu0 %v147
    %179 = vmatprep.subr.mxu0 0.0
    %180 = vmatpush1.msra.mxu0 %v148
    %181 = vmatprep.subr.mxu0 0.0
    %182 = vmatpush1.msra.mxu0 %v149
    %183 = vmatprep.subr.mxu0 0.0
    %184 = vmatpush1.msra.mxu0 %v150
    %185 = vmatprep.subr.mxu0 0.0
    %186 = vmatpush1.msra.mxu0 %v151
    %187 = vmatprep.subr.mxu0 0.0
    %188 = vmatpush1.msra.mxu0 %v152
    %189 = vmatprep.subr.mxu0 0.0
    %190 = vmatpush1.msra.mxu0 %v153
    %191 = vmatprep.subr.mxu0 0.0
    %192 = vmatpush1.msra.mxu0 0.0
    %193 = vmatprep.subr.mxu0 0.0
    %194 = vmatpush1.msra.mxu0 0.0
    %195 = vmatprep.subr.mxu0 0.0
    %196 = vmatpush1.msra.mxu0 0.0
    %197 = vmatprep.subr.mxu0 0.0
    %198 = vmatpush1.msra.mxu0 0.0
    %199 = vmatprep.subr.mxu0 0.0
    %200 = vmatpush1.msra.mxu0 0.0
    %201 = vmatprep.subr.mxu0 0.0
    %202 = vmatpush1.msra.mxu0 0.0
    %203 = vmatprep.subr.mxu0 0.0
    %204 = vmatpush1.msra.mxu0 0.0
    %205 = vmatprep.subr.mxu0 0.0
    %206 = vmatpush1.msra.mxu0 0.0
    %207 = vmatprep.subr.mxu0 0.0
    %208 = vmatpush1.msra.mxu0 0.0
    %209 = vmatprep.subr.mxu0 0.0
    %210 = vmatpush1.msra.mxu0 0.0
    %211 = vmatprep.subr.mxu0 0.0
    %212 = vmatpush1.msra.mxu0 0.0
    %213 = vmatprep.subr.mxu0 0.0
    %214 = vmatpush1.msra.mxu0 0.0
    %215 = vmatprep.subr.mxu0 0.0
    %216 = vmatpush1.msra.mxu0 0.0
    %217 = vmatprep.subr.mxu0 0.0
    %218 = vmatpush1.msra.mxu0 0.0
    %219 = vmatprep.subr.mxu0 0.0
    %220 = vmatpush1.msra.mxu0 0.0
    %221 = vmatprep.subr.mxu0 0.0
    %222 = vmatpush1.msra.mxu0 0.0
    %223 = vmatprep.mubr.f32.mxu0 0.0
    %224 = vmatmul.mubr.f32.gmra.mrb[0].mxu0 %v136
    %v225 = vpop.f32.mrb[0].mxu0
    %v226 = vadd.f32 %v158, %v225
    %v227 = vpop.f32.mrb[0].mxu0
    %228 = vdwg.mxu0
    %v229 = vmax.f32 %v226, 0.0
    %s230 = scalar_lea.vmem [#allocation5], 256
    %v231 = vld [vmem:[%s230] sm:$0xff]
    %v232 = vld [vmem:[%s230 + $0x8] sm:$0xff]
    %v233 = vld [vmem:[%s230 + $0x10] sm:$0xff]
    %v234 = vld [vmem:[%s230 + $0x18] sm:$0xff]
    %v235 = vld [vmem:[%s230 + $0x20] sm:$0xff]
    %v236 = vld [vmem:[%s230 + $0x28] sm:$0xff]
    %v237 = vld [vmem:[%s230 + $0x30] sm:$0xff]
    %v238 = vld [vmem:[%s230 + $0x38] sm:$0xff]
    %v239 = vld [vmem:[%s230 + $0x40] sm:$0xff]
    %v240 = vld [vmem:[%s230 + $0x48] sm:$0xff]
    %v241 = vld [vmem:[%s230 + $0x50] sm:$0xff]
    %v242 = vld [vmem:[%s230 + $0x58] sm:$0xff]
    %v243 = vld [vmem:[%s230 + $0x60] sm:$0xff]
    %v244 = vld [vmem:[%s230 + $0x68] sm:$0xff]
    %v245 = vld [vmem:[%s230 + $0x70] sm:$0xff]
    %v246 = vld [vmem:[%s230 + $0x78] sm:$0xff]
    %v247 = vld [vmem:[#allocation7 + $0x2] sm:$0x1]
    %v248 = vlaneseq
    %v249 = vshrl.u32 %v248, 7
    %v250 = vsub.s32 0, %v249
    %v251 = vrot.slane %v247, %v250
    %252 = vmatprep.subr.mxu0 0.0
    %253 = vmatpush1.msra.mxu0 %v231
    %254 = vmatprep.subr.mxu0 0.0
    %255 = vmatpush1.msra.mxu0 %v232
    %256 = vmatprep.subr.mxu0 0.0
    %257 = vmatpush1.msra.mxu0 %v233
    %258 = vmatprep.subr.mxu0 0.0
    %259 = vmatpush1.msra.mxu0 %v234
    %260 = vmatprep.subr.mxu0 0.0
    %261 = vmatpush1.msra.mxu0 %v235
    %262 = vmatprep.subr.mxu0 0.0
    %263 = vmatpush1.msra.mxu0 %v236
    %264 = vmatprep.subr.mxu0 0.0
    %265 = vmatpush1.msra.mxu0 %v237
    %266 = vmatprep.subr.mxu0 0.0
    %267 = vmatpush1.msra.mxu0 %v238
    %268 = vmatprep.subr.mxu0 0.0
    %269 = vmatpush1.msra.mxu0 %v239
    %270 = vmatprep.subr.mxu0 0.0
    %271 = vmatpush1.msra.mxu0 %v240
    %272 = vmatprep.subr.mxu0 0.0
    %273 = vmatpush1.msra.mxu0 %v241
    %274 = vmatprep.subr.mxu0 0.0
    %275 = vmatpush1.msra.mxu0 %v242
    %276 = vmatprep.subr.mxu0 0.0
    %277 = vmatpush1.msra.mxu0 %v243
    %278 = vmatprep.subr.mxu0 0.0
    %279 = vmatpush1.msra.mxu0 %v244
    %280 = vmatprep.subr.mxu0 0.0
    %281 = vmatpush1.msra.mxu0 %v245
    %282 = vmatprep.subr.mxu0 0.0
    %283 = vmatpush1.msra.mxu0 %v246
    %284 = vmatprep.subr.mxu0 0.0
    %285 = vmatpush1.msra.mxu0 0.0
    %286 = vmatprep.subr.mxu0 0.0
    %287 = vmatpush1.msra.mxu0 0.0
    %288 = vmatprep.subr.mxu0 0.0
    %289 = vmatpush1.msra.mxu0 0.0
    %290 = vmatprep.subr.mxu0 0.0
    %291 = vmatpush1.msra.mxu0 0.0
    %292 = vmatprep.subr.mxu0 0.0
    %293 = vmatpush1.msra.mxu0 0.0
    %294 = vmatprep.subr.mxu0 0.0
    %295 = vmatpush1.msra.mxu0 0.0
    %296 = vmatprep.subr.mxu0 0.0
    %297 = vmatpush1.msra.mxu0 0.0
    %298 = vmatprep.subr.mxu0 0.0
    %299 = vmatpush1.msra.mxu0 0.0
    %300 = vmatprep.subr.mxu0 0.0
    %301 = vmatpush1.msra.mxu0 0.0
    %302 = vmatprep.subr.mxu0 0.0
    %303 = vmatpush1.msra.mxu0 0.0
    %304 = vmatprep.subr.mxu0 0.0
    %305 = vmatpush1.msra.mxu0 0.0
    %306 = vmatprep.subr.mxu0 0.0
    %307 = vmatpush1.msra.mxu0 0.0
    %308 = vmatprep.subr.mxu0 0.0
    %309 = vmatpush1.msra.mxu0 0.0
    %310 = vmatprep.subr.mxu0 0.0
    %311 = vmatpush1.msra.mxu0 0.0
    %312 = vmatprep.subr.mxu0 0.0
    %313 = vmatpush1.msra.mxu0 0.0
    %314 = vmatprep.subr.mxu0 0.0
    %315 = vmatpush1.msra.mxu0 0.0
    %316 = vmatprep.mubr.f32.mxu0 0.0
    %317 = vmatmul.mubr.f32.gmra.mrb[0].mxu0 %v229
    %v318 = vpop.f32.mrb[0].mxu0
    %v319 = vadd.f32 %v251, %v318
    %v320 = vpop.f32.mrb[0].mxu0
    %321 = vdwg.mxu0
    %v322 = vmax.f32 %v319, 0.0
    %s323 = scalar_lea.vmem [#allocation5], 384
    %v324 = vld [vmem:[%s323] sm:$0xff]
    %v325 = vld [vmem:[%s323 + $0x8] sm:$0xff]
    %v326 = vld [vmem:[%s323 + $0x10] sm:$0xff]
    %v327 = vld [vmem:[%s323 + $0x18] sm:$0xff]
    %v328 = vld [vmem:[%s323 + $0x20] sm:$0xff]
    %v329 = vld [vmem:[%s323 + $0x28] sm:$0xff]
    %v330 = vld [vmem:[%s323 + $0x30] sm:$0xff]
    %v331 = vld [vmem:[%s323 + $0x38] sm:$0xff]
    %v332 = vld [vmem:[%s323 + $0x40] sm:$0xff]
    %v333 = vld [vmem:[%s323 + $0x48] sm:$0xff]
    %v334 = vld [vmem:[%s323 + $0x50] sm:$0xff]
    %v335 = vld [vmem:[%s323 + $0x58] sm:$0xff]
    %v336 = vld [vmem:[%s323 + $0x60] sm:$0xff]
    %v337 = vld [vmem:[%s323 + $0x68] sm:$0xff]
    %v338 = vld [vmem:[%s323 + $0x70] sm:$0xff]
    %v339 = vld [vmem:[%s323 + $0x78] sm:$0xff]
    %v340 = vld [vmem:[#allocation7 + $0x3] sm:$0x1]
    %v341 = vlaneseq
    %v342 = vshrl.u32 %v341, 7
    %v343 = vsub.s32 0, %v342
    %v344 = vrot.slane %v340, %v343
    %345 = vmatprep.subr.mxu0 0.0
    %346 = vmatpush1.msra.mxu0 %v324
    %347 = vmatprep.subr.mxu0 0.0
    %348 = vmatpush1.msra.mxu0 %v325
    %349 = vmatprep.subr.mxu0 0.0
    %350 = vmatpush1.msra.mxu0 %v326
    %351 = vmatprep.subr.mxu0 0.0
    %352 = vmatpush1.msra.mxu0 %v327
    %353 = vmatprep.subr.mxu0 0.0
    %354 = vmatpush1.msra.mxu0 %v328
    %355 = vmatprep.subr.mxu0 0.0
    %356 = vmatpush1.msra.mxu0 %v329
    %357 = vmatprep.subr.mxu0 0.0
    %358 = vmatpush1.msra.mxu0 %v330
    %359 = vmatprep.subr.mxu0 0.0
    %360 = vmatpush1.msra.mxu0 %v331
    %361 = vmatprep.subr.mxu0 0.0
    %362 = vmatpush1.msra.mxu0 %v332
    %363 = vmatprep.subr.mxu0 0.0
    %364 = vmatpush1.msra.mxu0 %v333
    %365 = vmatprep.subr.mxu0 0.0
    %366 = vmatpush1.msra.mxu0 %v334
    %367 = vmatprep.subr.mxu0 0.0
    %368 = vmatpush1.msra.mxu0 %v335
    %369 = vmatprep.subr.mxu0 0.0
    %370 = vmatpush1.msra.mxu0 %v336
    %371 = vmatprep.subr.mxu0 0.0
    %372 = vmatpush1.msra.mxu0 %v337
    %373 = vmatprep.subr.mxu0 0.0
    %374 = vmatpush1.msra.mxu0 %v338
    %375 = vmatprep.subr.mxu0 0.0
    %376 = vmatpush1.msra.mxu0 %v339
    %377 = vmatprep.subr.mxu0 0.0
    %378 = vmatpush1.msra.mxu0 0.0
    %379 = vmatprep.subr.mxu0 0.0
    %380 = vmatpush1.msra.mxu0 0.0
    %381 = vmatprep.subr.mxu0 0.0
    %382 = vmatpush1.msra.mxu0 0.0
    %383 = vmatprep.subr.mxu0 0.0
    %384 = vmatpush1.msra.mxu0 0.0
    %385 = vmatprep.subr.mxu0 0.0
    %386 = vmatpush1.msra.mxu0 0.0
    %387 = vmatprep.subr.mxu0 0.0
    %388 = vmatpush1.msra.mxu0 0.0
    %389 = vmatprep.subr.mxu0 0.0
    %390 = vmatpush1.msra.mxu0 0.0
    %391 = vmatprep.subr.mxu0 0.0
    %392 = vmatpush1.msra.mxu0 0.0
    %393 = vmatprep.subr.mxu0 0.0
    %394 = vmatpush1.msra.mxu0 0.0
    %395 = vmatprep.subr.mxu0 0.0
    %396 = vmatpush1.msra.mxu0 0.0
    %397 = vmatprep.subr.mxu0 0.0
    %398 = vmatpush1.msra.mxu0 0.0
    %399 = vmatprep.subr.mxu0 0.0
    %400 = vmatpush1.msra.mxu0 0.0
    %401 = vmatprep.subr.mxu0 0.0
    %402 = vmatpush1.msra.mxu0 0.0
    %403 = vmatprep.subr.mxu0 0.0
    %404 = vmatpush1.msra.mxu0 0.0
    %405 = vmatprep.subr.mxu0 0.0
    %406 = vmatpush1.msra.mxu0 0.0
    %407 = vmatprep.subr.mxu0 0.0
    %408 = vmatpush1.msra.mxu0 0.0
    %409 = vmatprep.mubr.f32.mxu0 0.0
    %410 = vmatmul.mubr.f32.gmra.mrb[0].mxu0 %v322
    %v411 = vpop.f32.mrb[0].mxu0
    %v412 = vadd.f32 %v344, %v411
    %v413 = vpop.f32.mrb[0].mxu0
    %414 = vdwg.mxu0
    %v415 = vld [vmem:[#allocation7 + $0x4] sm:$0x1]
    %v416 = vlaneseq
    %v417 = vshrl.u32 %v416, 7
    %v418 = vsub.s32 0, %v417
    %v419 = vrot.slane %v415, %v418
    %v420 = vadd.f32 %v412, %v419
    %421 = vmax.xlane.f32.xlu0 %v420
    %v422 = vpop.xlane.xlu0 %421
    %v423 = vsub.f32 %v420, %v422
    %v424 = vmul.f32 %v423, 1.442695
    %v425 = vpow.pop %v424
    %426 = vadd.xlane.f32.xlu0 %v425
    %v427 = vpop.xlane.xlu0 %426
    %v428 = vrcp.pop %v427
    %v429 = vmul.f32 %v425, %v428
    %v430 = vadd.f32 %v322, %v429
    %v431 = vld [vmem:[#allocation7 + $0x5] sm:$0x1]
    %v432 = vlaneseq
    %v433 = vshrl.u32 %v432, 7
    %v434 = vsub.s32 0, %v433
    %v435 = vrot.slane %v431, %v434
    %v436 = vmul.f32 %v412, %v435
    %v437 = vadd.f32 %v430, %v436
    %438 = vst [vmem:[#allocation8] sm:$0xff] %v437
    // Predicated region
    $region26: #{tpu_custom_call.1} parent=1 // pred_check
      _
    $region27: #{tpu_custom_call.1} parent=1 // pred_check_branch
      %440 = sbr.rel (0) target = $region29
    $region28: #{tpu_custom_call.1} parent=1 // pred_region
      %s442 = ssub.s32 128, 128
      %443 = vsyncadd [#allocation4], %s442
      %s445 = sshll.u32 [#allocation8], 4
      %s446 = int_to_ptr.vmem [resolvable:$true] %s445
      %448 = dma.vmem_to_hbm [thread:$0]  %s446, 128, %s3, [#allocation4]
    $region29: #{tpu_custom_call.1} parent=1 // pred_fallthru
      _
    // Predicated region
    $region30: #{tpu_custom_call.1} parent=1 // pred_check
      _
    $region31: #{tpu_custom_call.1} parent=1 // pred_check_branch
      %450 = sbr.rel (0) target = $region33
    $region32: #{tpu_custom_call.1} parent=1 // pred_region
      %451 = dma.done [#allocation4], 128
    $region33: #{tpu_custom_call.1} parent=1 // pred_fallthru
      _
    %452 = vsyncpa [#allocation3], 1
    %453 = vsyncpa [#allocation6], 1
    %454 = vsyncpa [#allocation4], 1

</llo_original>
